<compile_context>
chip_gen: v7x
topology: tpu7x:2x2x1
jax: 0.10.0
libtpu: 0.0.40
codegen_flags: <defaults>
</compile_context>

<pallas_src>
import functools

import jax
import jax.numpy as jnp
from jax.experimental import pallas as pl
from jax.experimental.pallas import tpu as pltpu


def _avg_linear_kernel(x_ref, w_ref, b_ref, o_ref, *, inv_hw):
    # x_ref: (TB, C, HW) input dtype ; w_ref: (C, OUT) f32 ; b_ref: (1, OUT) f32
    # o_ref: (TB, OUT) f32
    x = x_ref[...].astype(jnp.float32)              # cast in-vreg (v5e has no bf16 VPU)
    pooled = jnp.sum(x, axis=-1) * inv_hw           # (TB, C) f32 global average pool
    y = jnp.dot(pooled, w_ref[...],
                preferred_element_type=jnp.float32)  # (TB, OUT) MXU matmul
    o_ref[...] = (y + b_ref[...]).astype(o_ref.dtype)


def _choose_batch_tile(B, C, HW, itemsize, budget_bytes):
    """Largest batch tile whose double-buffered x block fits the VMEM budget."""
    per_row = C * HW * itemsize                      # bytes of x per batch element
    tb = max(1, budget_bytes // (2 * per_row))       # 2x for double buffering
    if tb >= B:
        return B                                     # single full-batch block
    # Output block is (TB, OUT): second-to-last dim must be a multiple of 8
    # (or the full extent), so round the tile down to a multiple of 8.
    return max(8, (tb // 8) * 8)


def avg_linear_map(x_nchw, weight, bias, *, x_block_budget_bytes=4 << 20):
    """x_nchw: (B, C, H, W); weight: (OUT, C) (torch layout); bias: (OUT,)."""
    B, C, H, W = x_nchw.shape
    OUT = weight.shape[0]
    HW = H * W

    # Glue reshape only -- keep the input dtype (no HBM-doubling upcast).
    x_flat = x_nchw.reshape(B, C, HW)
    w_t = weight.T.astype(jnp.float32)               # (C, OUT), tiny, VMEM-resident
    b = bias.reshape(1, OUT).astype(jnp.float32)

    tb = _choose_batch_tile(B, C, HW, x_flat.dtype.itemsize, x_block_budget_bytes)
    n_tiles = pl.cdiv(B, tb)
    b_pad = n_tiles * tb
    if b_pad != B:
        # Pad batch so the grid divides evenly; padded rows are sliced off below.
        x_flat = jnp.pad(x_flat, ((0, b_pad - B), (0, 0), (0, 0)))

    kernel = functools.partial(_avg_linear_kernel, inv_hw=1.0 / float(HW))

    itemsize = x_flat.dtype.itemsize
    cost = pl.CostEstimate(
        flops=2 * b_pad * C * OUT + b_pad * C * HW,
        transcendentals=0,
        bytes_accessed=(b_pad * C * HW * itemsize      # read x (dominant)
                        + C * OUT * 4 + OUT * 4        # read w, b
                        + b_pad * OUT * 4),            # write out
    )

    out = pl.pallas_call(
        kernel,
        out_shape=jax.ShapeDtypeStruct((b_pad, OUT), jnp.float32),
        grid_spec=pltpu.PrefetchScalarGridSpec(
            num_scalar_prefetch=0,
            grid=(n_tiles,),
            in_specs=[
                pl.BlockSpec((tb, C, HW), lambda i: (i, 0, 0)),   # batch-tiled x
                pl.BlockSpec((C, OUT), lambda i: (0, 0)),         # weight, resident
                pl.BlockSpec((1, OUT), lambda i: (0, 0)),         # bias, resident
            ],
            out_specs=pl.BlockSpec((tb, OUT), lambda i: (i, 0)),
        ),
        compiler_params=pltpu.CompilerParams(
            dimension_semantics=("parallel",)),       # shards across TCs on v7x
        cost_estimate=cost,
    )(x_flat, w_t, b)

    return out[:B] if b_pad != B else out


if __name__ == "__main__":
    # Small shapes consistent with the module: B=2, C(inplanes)=4, H=W=16, outplanes=8
    B, C, H, W, OUT = 2, 4, 16, 16, 8

    key = jax.random.PRNGKey(0)
    kx, kw, kb = jax.random.split(key, 3)

    x = jax.random.normal(kx, (B, C, H, W), dtype=jnp.float32)
    # Deterministic parameter init (shapes from nn.Linear(inplanes, outplanes)).
    bound = 1.0 / jnp.sqrt(C)
    weight = jax.random.uniform(kw, (OUT, C), minval=-bound, maxval=bound,
                                dtype=jnp.float32)
    bias = jax.random.uniform(kb, (OUT,), minval=-bound, maxval=bound,
                              dtype=jnp.float32)

    out = avg_linear_map(x, weight, bias)
    out = jax.block_until_ready(out)

    # Pure-JAX reference check of the same semantics.
    ref = jnp.mean(x, axis=(2, 3)) @ weight.T + bias
    assert out.shape == (B, OUT)
    assert jnp.allclose(out, ref, atol=1e-5, rtol=1e-5)

    print("KERNEL_OK")
</pallas_src>

<mosaic_0001>
module attributes {stable_mosaic.version = 11 : i64} {
  func.func @_avg_linear_kernel(%arg0: i32, %arg1: memref<2x4x256xf32, #tpu.memory_space<vmem>>, %arg2: memref<4x8xf32, #tpu.memory_space<vmem>>, %arg3: memref<1x8xf32, #tpu.memory_space<vmem>>, %arg4: memref<2x8xf32, #tpu.memory_space<vmem>>) attributes {dimension_semantics = [#tpu.dimension_semantics<parallel>], iteration_bounds = array<i64: 1>, scalar_prefetch = 0 : i64, scratch_operands = 0 : i64, tpu.core_type = #tpu.core_type<tc>, window_params = [{transform_indices = @transform_0, window_bounds = array<i64: 2, 4, 256>}, {pipeline_mode = #tpu.pipeline_mode<synchronous>, transform_indices = @transform_1, window_bounds = array<i64: 4, 8>}, {pipeline_mode = #tpu.pipeline_mode<synchronous>, transform_indices = @transform_2, window_bounds = array<i64: 1, 8>}, {transform_indices = @transform_3, window_bounds = array<i64: 2, 8>}]} {
    %c0 = arith.constant 0 : index
    %c0_0 = arith.constant 0 : index
    %c0_1 = arith.constant 0 : index
    %0 = vector.load %arg1[%c0, %c0_0, %c0_1] : memref<2x4x256xf32, #tpu.memory_space<vmem>>, vector<2x4x256xf32>
    %cst = arith.constant dense<0.000000e+00> : vector<2x4xf32>
    %1 = vector.multi_reduction <add>, %0, %cst [2] : vector<2x4x256xf32> to vector<2x4xf32>
    %cst_2 = arith.constant 3.906250e-03 : f32
    %2 = vector.broadcast %cst_2 : f32 to vector<2x4xf32>
    %3 = arith.mulf %1, %2 : vector<2x4xf32>
    %c0_3 = arith.constant 0 : index
    %c0_4 = arith.constant 0 : index
    %4 = vector.load %arg2[%c0_3, %c0_4] : memref<4x8xf32, #tpu.memory_space<vmem>>, vector<4x8xf32>
    %cst_5 = arith.constant dense<0.000000e+00> : vector<2x8xf32>
    %5 = tpu.matmul %3, %4, %cst_5 {dimension_numbers = #tpu.dot_dimension_numbers<[1], [0], [0], [1], [0, 0, 1, 1], [], []>} : vector<2x4xf32>, vector<4x8xf32>, vector<2x8xf32> -> vector<2x8xf32>
    %c0_6 = arith.constant 0 : index
    %c0_7 = arith.constant 0 : index
    %6 = vector.load %arg3[%c0_6, %c0_7] : memref<1x8xf32, #tpu.memory_space<vmem>>, vector<1x8xf32>
    %7 = vector.broadcast %6 : vector<1x8xf32> to vector<2x8xf32>
    %8 = arith.addf %5, %7 : vector<2x8xf32>
    %c0_8 = arith.constant 0 : index
    %c0_9 = arith.constant 0 : index
    %9 = vector.load %arg4[%c0_8, %c0_9] : memref<2x8xf32, #tpu.memory_space<vmem>>, vector<2x8xf32>
    tpu.vector_store %arg4[%c0_8, %c0_9], %8 {strides = array<i32>} : memref<2x8xf32, #tpu.memory_space<vmem>>, vector<2x8xf32>,
    return
  }
  func.func @transform_0(%arg0: i32) -> (i32, i32, i32) {
    %c0_i32 = arith.constant 0 : i32
    %c0_i32_0 = arith.constant 0 : i32
    %c0_i32_1 = arith.constant 0 : i32
    return %arg0, %c0_i32, %c0_i32_0 : i32, i32, i32
  }
  func.func @transform_1(%arg0: i32) -> (i32, i32) {
    %c0_i32 = arith.constant 0 : i32
    %c0_i32_0 = arith.constant 0 : i32
    %c0_i32_1 = arith.constant 0 : i32
    return %c0_i32, %c0_i32_0 : i32, i32
  }
  func.func @transform_2(%arg0: i32) -> (i32, i32) {
    %c0_i32 = arith.constant 0 : i32
    %c0_i32_0 = arith.constant 0 : i32
    %c0_i32_1 = arith.constant 0 : i32
    return %c0_i32, %c0_i32_0 : i32, i32
  }
  func.func @transform_3(%arg0: i32) -> (i32, i32) {
    %c0_i32 = arith.constant 0 : i32
    %c0_i32_0 = arith.constant 0 : i32
    return %arg0, %c0_i32 : i32, i32
  }
}

</mosaic_0001>

<llo_original>
// kernel: tpu_custom_call.1
$region0: #{tpu_custom_call.1}
  #allocation0 [shape = 'u32[]', space=smem, size = 0x4, offset = 0x4, fixed_abs, tag = 'smem constant byte address 0x4 - core index']
  #allocation1 [shape = 'u32[144,128]{1,0:T(1,128)}', space=vmem, size = 0x12000, scoped, tag = 'internal scratch']
  %s0 = inlined_call_operand.hbm [shape: f32[2,4,256], index: 0, kind: input, shape index: {}]
  %s1 = inlined_call_operand.hbm [shape: f32[4,8], index: 1, kind: input, shape index: {}]
  %s2 = inlined_call_operand.vmem [shape: f32[1,8], index: 2, kind: input, shape index: {}]
  %s3 = inlined_call_operand.hbm [shape: f32[2,8], index: 3, kind: output, shape index: {}]
  %s4 = sld [smem:[#allocation0]]
  $region30: #{tpu_custom_call.1} parent=0
    _
  %s6 = ssub.s32 1, %s4
  %s7 = scalar_select 0, %s6, %s4
  $region1: #{tpu_custom_call.1} parent=0
    #allocation2 [shape = 'u8[8192]{0}', space=vmem, size = 0x2000, scoped, tag = 'input window, operand 0, single buffered']
    #allocation3 [shape = 's32[1]{0}', space=sflag, size = 0x4, scoped, tag = 'scoped memory for tpu_custom_call.1']
    #allocation4 [shape = 's32[1]{0}', space=sflag, size = 0x4, scoped, tag = 'scoped memory for tpu_custom_call.1']
    #allocation5 [shape = 'u8[2048]{0}', space=vmem, size = 0x800, scoped, tag = 'input window, operand 1, single buffered']
    #allocation6 [shape = 's32[1]{0}', space=sflag, size = 0x4, scoped, tag = 'scoped memory for tpu_custom_call.1']
    #allocation7 [shape = 'u8[1024]{0}', space=vmem, size = 0x400, scoped, tag = 'output window, operand 0, single buffered']
    %8 = vsyncpa [#allocation3], 0
    %9 = vsyncpa [#allocation6], 0
    %10 = vsyncpa [#allocation4], 0
    // Predicated region
    $region2: #{tpu_custom_call.1} parent=1 // pred_check
      _
    $region3: #{tpu_custom_call.1} parent=1 // pred_check_branch
      %12 = sbr.rel (0) target = $region5
    $region4: #{tpu_custom_call.1} parent=1 // pred_region
      %s14 = ssub.s32 256, 256
      %15 = vsyncadd [#allocation3], %s14
      %s16 = sshll.u32 [#allocation2], 4
      %s17 = int_to_ptr.vmem [resolvable:$true] %s16
      %22 = dma.hbm_to_vmem [thread:$0]  %s0, 256, %s17, [#allocation3], 128, 128, 8
    $region5: #{tpu_custom_call.1} parent=1 // pred_fallthru
      _
    // Predicated region
    $region6: #{tpu_custom_call.1} parent=1 // pred_check
      _
    $region7: #{tpu_custom_call.1} parent=1 // pred_check_branch
      %24 = sbr.rel (0) target = $region9
    $region8: #{tpu_custom_call.1} parent=1 // pred_region
      %s26 = ssub.s32 64, 64
      %27 = vsyncadd [#allocation6], %s26
      %s29 = sshll.u32 [#allocation5], 4
      %s30 = int_to_ptr.vmem [resolvable:$true] %s29
      %32 = dma.hbm_to_vmem [thread:$0]  %s1, 64, %s30, [#allocation6]
    $region9: #{tpu_custom_call.1} parent=1 // pred_fallthru
      _
    // Predicated region
    $region10: #{tpu_custom_call.1} parent=1 // pred_check
      _
    $region11: #{tpu_custom_call.1} parent=1 // pred_check_branch
      %34 = sbr.rel (0) target = $region13
    $region12: #{tpu_custom_call.1} parent=1 // pred_region
      _
    $region13: #{tpu_custom_call.1} parent=1 // pred_fallthru
      _
    // Predicated region
    $region14: #{tpu_custom_call.1} parent=1 // pred_check
      _
    $region15: #{tpu_custom_call.1} parent=1 // pred_check_branch
      %36 = sbr.rel (0) target = $region17
    $region16: #{tpu_custom_call.1} parent=1 // pred_region
      %37 = dma.done [#allocation3], 256
    $region17: #{tpu_custom_call.1} parent=1 // pred_fallthru
      _
    // Predicated region
    $region18: #{tpu_custom_call.1} parent=1 // pred_check
      _
    $region19: #{tpu_custom_call.1} parent=1 // pred_check_branch
      %39 = sbr.rel (0) target = $region21
    $region20: #{tpu_custom_call.1} parent=1 // pred_region
      %40 = dma.done [#allocation6], 64
    $region21: #{tpu_custom_call.1} parent=1 // pred_fallthru
      _
    %v41 = vld [vmem:[#allocation2] sm:$0xff]
    %v42 = vld [vmem:[#allocation2 + $0x8] sm:$0xff]
    %v45 = vcombine.high %v41, %v41
    %v46 = vcombine.high %v42, %v42
    %vm49 = vcmask 1043456
    %v50 = vsel %vm49, %v41, 0.0
    %v51 = vsel %vm49, %v45, 0.0
    %v52 = vadd.f32 %v50, %v51
    %53 = vadd.xlane.f32.xlu0 %v52
    %v54 = vpop.xlane.xlu0 %53
    %v55 = vsel %vm49, %v42, 0.0
    %v56 = vsel %vm49, %v46, 0.0
    %v57 = vadd.f32 %v55, %v56
    %58 = vadd.xlane.f32.xlu0 %v57
    %v59 = vpop.xlane.xlu0 %58
    %v60 = vmul.f32 %v54, 0.00390625
    %v61 = vmul.f32 %v59, 0.00390625
    %v62 = vld [vmem:[#allocation5] sm:$0xf]
    %v63 = vld [vmem:[%s2] sm:$0x1]
    %v65 = vlaneseq
    %v66 = vshrl.u32 %v65, 7
    %v67 = vsub.s32 0, %v66
    %v68 = vrot.slane %v63, %v67
    %v72 = vlaneseq
    %v73 = vand.u32 %v72, 127
    %v74 = vlaneseq
    %v75 = vshrl.u32 %v74, 7
    %v76 = vsub.s32 %v73, %v75
    %v77 = vrot.slane %v60, %v76
    %v78 = vlaneseq
    %v79 = vshrl.u32 %v78, 7
    %v80 = vsub.s32 %v73, %v79
    %v81 = vrot.slane %v61, %v80
    %vm82 = vcmask 1041409
    %v83 = vsel %vm82, %v81, %v77
    %vm84 = vcmask 31744
    %v85 = vsel %vm84, %v83, 0
    %v88 = vsel %vm49, %v62, 0
    %90 = vmatprep.subr.mxu0 0.0
    %91 = vmatpush1.msra.mxu0 %v88
    %92 = vmatprep.subr.mxu0 0.0
    %93 = vmatpush1.msra.mxu0 0.0
    %94 = vmatprep.subr.mxu0 0.0
    %95 = vmatpush1.msra.mxu0 0.0
    %96 = vmatprep.subr.mxu0 0.0
    %97 = vmatpush1.msra.mxu0 0.0
    %98 = vmatprep.subr.mxu0 0.0
    %99 = vmatpush1.msra.mxu0 0.0
    %100 = vmatprep.subr.mxu0 0.0
    %101 = vmatpush1.msra.mxu0 0.0
    %102 = vmatprep.subr.mxu0 0.0
    %103 = vmatpush1.msra.mxu0 0.0
    %104 = vmatprep.subr.mxu0 0.0
    %105 = vmatpush1.msra.mxu0 0.0
    %106 = vmatprep.subr.mxu0 0.0
    %107 = vmatpush1.msra.mxu0 0.0
    %108 = vmatprep.subr.mxu0 0.0
    %109 = vmatpush1.msra.mxu0 0.0
    %110 = vmatprep.subr.mxu0 0.0
    %111 = vmatpush1.msra.mxu0 0.0
    %112 = vmatprep.subr.mxu0 0.0
    %113 = vmatpush1.msra.mxu0 0.0
    %114 = vmatprep.subr.mxu0 0.0
    %115 = vmatpush1.msra.mxu0 0.0
    %116 = vmatprep.subr.mxu0 0.0
    %117 = vmatpush1.msra.mxu0 0.0
    %118 = vmatprep.subr.mxu0 0.0
    %119 = vmatpush1.msra.mxu0 0.0
    %120 = vmatprep.subr.mxu0 0.0
    %121 = vmatpush1.msra.mxu0 0.0
    %122 = vmatprep.subr.mxu0 0.0
    %123 = vmatpush1.msra.mxu0 0.0
    %124 = vmatprep.subr.mxu0 0.0
    %125 = vmatpush1.msra.mxu0 0.0
    %126 = vmatprep.subr.mxu0 0.0
    %127 = vmatpush1.msra.mxu0 0.0
    %128 = vmatprep.subr.mxu0 0.0
    %129 = vmatpush1.msra.mxu0 0.0
    %130 = vmatprep.subr.mxu0 0.0
    %131 = vmatpush1.msra.mxu0 0.0
    %132 = vmatprep.subr.mxu0 0.0
    %133 = vmatpush1.msra.mxu0 0.0
    %134 = vmatprep.subr.mxu0 0.0
    %135 = vmatpush1.msra.mxu0 0.0
    %136 = vmatprep.subr.mxu0 0.0
    %137 = vmatpush1.msra.mxu0 0.0
    %138 = vmatprep.subr.mxu0 0.0
    %139 = vmatpush1.msra.mxu0 0.0
    %140 = vmatprep.subr.mxu0 0.0
    %141 = vmatpush1.msra.mxu0 0.0
    %142 = vmatprep.subr.mxu0 0.0
    %143 = vmatpush1.msra.mxu0 0.0
    %144 = vmatprep.subr.mxu0 0.0
    %145 = vmatpush1.msra.mxu0 0.0
    %146 = vmatprep.subr.mxu0 0.0
    %147 = vmatpush1.msra.mxu0 0.0
    %148 = vmatprep.subr.mxu0 0.0
    %149 = vmatpush1.msra.mxu0 0.0
    %150 = vmatprep.subr.mxu0 0.0
    %151 = vmatpush1.msra.mxu0 0.0
    %152 = vmatprep.subr.mxu0 0.0
    %153 = vmatpush1.msra.mxu0 0.0
    %154 = vmatprep.mubr.f32.mxu0 0.0
    %155 = vmatmul.mubr.f32.gmra.mrb[0].mxu0 %v85
    %v156 = vpop.f32.mrb[0].mxu0
    %v157 = vadd.f32 %v68, %v156
    %v158 = vpop.f32.mrb[0].mxu0
    %159 = vdwg.mxu0
    %vm160 = vcmask 58368
    %161 = vst.msk [vmem:[#allocation7] sm:$0x3] %vm160, %v157
    // Predicated region
    $region22: #{tpu_custom_call.1} parent=1 // pred_check
      _
    $region23: #{tpu_custom_call.1} parent=1 // pred_check_branch
      %163 = sbr.rel (0) target = $region25
    $region24: #{tpu_custom_call.1} parent=1 // pred_region
      %s165 = ssub.s32 32, 32
      %166 = vsyncadd [#allocation4], %s165
      %s168 = sshll.u32 [#allocation7], 4
      %s169 = int_to_ptr.vmem [resolvable:$true] %s168
      %171 = dma.vmem_to_hbm [thread:$0]  %s169, 32, %s3, [#allocation4]
    $region25: #{tpu_custom_call.1} parent=1 // pred_fallthru
      _
    // Predicated region
    $region26: #{tpu_custom_call.1} parent=1 // pred_check
      _
    $region27: #{tpu_custom_call.1} parent=1 // pred_check_branch
      %173 = sbr.rel (0) target = $region29
    $region28: #{tpu_custom_call.1} parent=1 // pred_region
      %174 = dma.done [#allocation4], 32
    $region29: #{tpu_custom_call.1} parent=1 // pred_fallthru
      _
    %175 = vsyncpa [#allocation3], 1
    %176 = vsyncpa [#allocation6], 1
    %177 = vsyncpa [#allocation4], 1

</llo_original>
